<compile_context>
chip_gen: v7x
topology: tpu7x:2x2x1
jax: 0.10.0
libtpu: 0.0.40
codegen_flags: <defaults>
</compile_context>

<pallas_src>
import functools

import jax
import jax.numpy as jnp
from jax import lax
from jax.experimental import pallas as pl
from jax.experimental.pallas import tpu as pltpu


def _round_up(x, m):
    return ((x + m - 1) // m) * m


def _cdiv(a, b):
    return (a + b - 1) // b


def _general_attention_kernel(q_ids_ref, k_ids_ref, last_ref,
                              corr_ref, x_ref, o_ref, den_ref, *, tq, tk):
    """One (query-tile, kv-tile) step of the triangular grid.

    q_ids_ref/k_ids_ref/last_ref : SMEM int32 (n_steps,) scalar-prefetch arrays
    corr_ref : (1, TQ, Hp) bf16 pre-projected queries (corr = x @ W.T + b)
    x_ref    : (1, TK, Hp) bf16 kv slice of the original input
    o_ref    : (1, TQ, Hp) f32  output block; resident accumulator across kv
    den_ref  : (TQ, 1)     f32  running row-sum of masked scores
    """
    t = pl.program_id(1)
    q = q_ids_ref[t]
    k = k_ids_ref[t]

    # First kv tile for this query tile -> reset the resident accumulators.
    @pl.when(k == 0)
    def _init():
        o_ref[...] = jnp.zeros_like(o_ref)
        den_ref[...] = jnp.zeros_like(den_ref)

    corr = corr_ref[0]                                    # (TQ, Hp) bf16
    xk = x_ref[0]                                         # (TK, Hp) bf16

    # logits[i, j] = corr[i] . x[j]  (NT dot_general: bf16 operands, f32 acc;
    # no explicit transpose through the XLU).
    logits = lax.dot_general(
        corr, xk,
        dimension_numbers=(((1,), (1,)), ((), ())),
        preferred_element_type=jnp.float32)               # (TQ, TK) f32
    # exp in f32 -> overflow behaviour matches the PyTorch reference.
    scores = jnp.exp(logits)

    def _accumulate(masked):
        o_ref[0] += jnp.dot(masked.astype(xk.dtype), xk,
                            preferred_element_type=jnp.float32)
        den_ref[...] += jnp.sum(masked, axis=-1, keepdims=True)

    # Only tiles that intersect the diagonal need the strictly-lower mask;
    # tiles fully below it use the raw scores (no iota/compare/select work).
    needs_mask = q * tq < (k + 1) * tk

    @pl.when(needs_mask)
    def _diagonal_tile():
        row = q * tq + lax.broadcasted_iota(jnp.int32, (tq, 1), 0)
        col = k * tk + lax.broadcasted_iota(jnp.int32, (1, tk), 1)
        # jnp.where avoids inf*0 = NaN if exp overflows on masked entries.
        _accumulate(jnp.where(row > col, scores, 0.0))

    @pl.when(jnp.logical_not(needs_mask))
    def _interior_tile():
        _accumulate(scores)

    # Last kv tile for this query tile -> normalize the output in place.
    @pl.when(last_ref[t] != 0)
    def _finalize():
        inv = pl.reciprocal(den_ref[...] + 1e-10, approx=True)   # EUP slot
        o_ref[0] = (o_ref[0] * inv).astype(o_ref.dtype)


def general_attention(x, weight, bias):
    """x: (B, S, H) f32; weight: (H, H) nn.Linear layout (out, in); bias: (H,)."""
    B, S, H = x.shape

    # Projection hoisted to XLA: a (B*S, H) x (H, H) matmul with small H would
    # badly underfill the MXU inside the kernel and re-run per (b, q) tile.
    corr = (x.reshape(B * S, H) @ weight.T + bias).reshape(B, S, H)

    # Lane-dense padding + bf16 storage (halves x/corr HBM traffic and feeds
    # the MXU bf16 operands directly).  Zero padding is inert in the dots.
    Hp = _round_up(H, 128)
    Tq = min(256, _round_up(S, 8))            # query tile (multiple of 8)
    Tk = min(512, _round_up(S, Tq))           # kv tile (multiple of Tq)
    Sp = _round_up(S, Tk)

    xp = jnp.pad(x, ((0, 0), (0, Sp - S), (0, Hp - H))).astype(jnp.bfloat16)
    cp = jnp.pad(corr, ((0, 0), (0, Sp - S), (0, Hp - H))).astype(jnp.bfloat16)

    # Triangular (q, k) tile enumeration: only tiles containing some (i, j)
    # with i > j, and only query tiles holding at least one valid row (< S).
    # kv tiles of a given q stay contiguous & in order (accumulator pattern).
    n_q_valid = _cdiv(S, Tq)
    q_list, k_list, last_list = [], [], []
    for qt in range(n_q_valid):
        k_last = (qt * Tq + Tq - 1) // Tk
        for kt in range(k_last + 1):
            q_list.append(qt)
            k_list.append(kt)
            last_list.append(1 if kt == k_last else 0)
    n_steps = len(q_list)
    q_ids = jnp.asarray(q_list, jnp.int32)
    k_ids = jnp.asarray(k_list, jnp.int32)
    last_flags = jnp.asarray(last_list, jnp.int32)

    # VMEM budget: double-buffered bf16 corr/x blocks, resident f32 out block,
    # denominator scratch, plus the (TQ, TK) f32 score temporaries (may spill).
    needed = (2 * Tq * Hp * 2 + 2 * Tk * Hp * 2 + 2 * Tq * Hp * 4
              + Tq * 128 * 4 + 2 * Tq * Tk * 4)
    # Clamp below v7x's 64 MiB physical VMEM to leave compiler headroom.
    vmem_limit = int(min(max(needed + (16 << 20), 32 << 20), 48 << 20))

    kernel = functools.partial(_general_attention_kernel, tq=Tq, tk=Tk)

    out_p = pl.pallas_call(
        kernel,
        out_shape=jax.ShapeDtypeStruct((B, Sp, Hp), jnp.float32),
        grid_spec=pltpu.PrefetchScalarGridSpec(
            num_scalar_prefetch=3,
            grid=(B, n_steps),
            in_specs=[
                pl.BlockSpec((1, Tq, Hp), lambda b, t, qi, ki, li: (b, qi[t], 0)),  # corr
                pl.BlockSpec((1, Tk, Hp), lambda b, t, qi, ki, li: (b, ki[t], 0)),  # x (kv)
            ],
            out_specs=pl.BlockSpec((1, Tq, Hp), lambda b, t, qi, ki, li: (b, qi[t], 0)),
            scratch_shapes=[
                pltpu.VMEM((Tq, 1), jnp.float32),      # running denominator
            ],
        ),
        compiler_params=pltpu.CompilerParams(
            dimension_semantics=("parallel", "arbitrary"),
            vmem_limit_bytes=vmem_limit,
        ),
    )(q_ids, k_ids, last_flags, cp, xp)

    return out_p[:, :S, :H]


def _reference(x, weight, bias):
    """Pure-JAX f32 reference mirroring the PyTorch module line by line."""
    B, S, H = x.shape
    corr = (x.reshape(B * S, H) @ weight.T + bias).reshape(B, S, H)
    scores = jnp.exp(jnp.einsum('bid,bjd->bij', corr, x))
    flag = jnp.triu(jnp.ones((S, S), jnp.float32), k=1).T[None]
    den = jnp.sum(scores * flag, -1, keepdims=True) + 1e-10
    w = scores * flag / den
    return jnp.einsum('bij,bjd->bid', w, x)


def _reference_bf16(x, weight, bias):
    """Reference mirroring the kernel's bf16-operand / f32-accumulate math."""
    B, S, H = x.shape
    corr = (x.reshape(B * S, H) @ weight.T + bias).reshape(B, S, H)
    cb = corr.astype(jnp.bfloat16)
    xb = x.astype(jnp.bfloat16)
    logits = jnp.einsum('bid,bjd->bij', cb, xb, preferred_element_type=jnp.float32)
    scores = jnp.exp(logits)
    flag = (jnp.arange(S)[:, None] > jnp.arange(S)[None, :]).astype(jnp.float32)[None]
    masked = scores * flag
    den = jnp.sum(masked, -1, keepdims=True) + 1e-10
    num = jnp.einsum('bij,bjd->bid', masked.astype(jnp.bfloat16), xb,
                     preferred_element_type=jnp.float32)
    return num / den


if __name__ == "__main__":
    key = jax.random.PRNGKey(0)
    k_x, k_w, k_b = jax.random.split(key, 3)

    B, S, H = 2, 8, 32
    x = 0.5 * jax.random.normal(k_x, (B, S, H), dtype=jnp.float32)

    # Deterministic nn.Linear-style init (uniform in +/- 1/sqrt(H)).
    bound = 1.0 / (H ** 0.5)
    weight = jax.random.uniform(k_w, (H, H), jnp.float32, -bound, bound)
    bias = jax.random.uniform(k_b, (H,), jnp.float32, -bound, bound)

    out = jax.block_until_ready(jax.jit(general_attention)(x, weight, bias))
    assert out.shape == (B, S, H)

    # Tight check vs a reference mirroring the kernel's bf16/f32 math
    # (validates masking, normalization and the triangular-grid accumulation).
    ref_bf16 = _reference_bf16(x, weight, bias)
    assert jnp.allclose(out, ref_bf16, atol=5e-3, rtol=5e-3), \
        "mismatch vs bf16-mirror reference"

    # Loose sanity check vs the exact f32 PyTorch-equivalent reference; the
    # tolerance reflects the intentional bf16 matmul operands.
    ref_f32 = _reference(x, weight, bias)
    assert jnp.allclose(out, ref_f32, atol=1e-1, rtol=1e-1), \
        "mismatch vs f32 reference"

    print("KERNEL_OK")
</pallas_src>

<mosaic_0001>
module attributes {stable_mosaic.version = 11 : i64} {
  func.func @_general_attention_kernel(%arg0: i32, %arg1: i32, %arg2: memref<1xi32, #tpu.memory_space<smem>>, %arg3: memref<1xi32, #tpu.memory_space<smem>>, %arg4: memref<1xi32, #tpu.memory_space<smem>>, %arg5: memref<1x8x128xbf16, #tpu.memory_space<vmem>>, %arg6: memref<1x8x128xbf16, #tpu.memory_space<vmem>>, %arg7: memref<1x8x128xf32, #tpu.memory_space<vmem>>, %arg8: memref<8x1xf32, #tpu.memory_space<vmem>>) attributes {dimension_semantics = [#tpu.dimension_semantics<parallel>, #tpu.dimension_semantics<arbitrary>], iteration_bounds = array<i64: 2, 1>, scalar_prefetch = 3 : i64, scratch_operands = 1 : i64, tpu.core_type = #tpu.core_type<tc>, window_params = [{transform_indices = @transform_0, window_bounds = array<i64: 1, 8, 128>}, {transform_indices = @transform_1, window_bounds = array<i64: 1, 8, 128>}, {transform_indices = @transform_2, window_bounds = array<i64: 1, 8, 128>}]} {
    %0 = arith.index_cast %arg1 : i32 to index
    %1 = memref.load %arg2[%0] : memref<1xi32, #tpu.memory_space<smem>>
    %2 = arith.index_cast %arg1 : i32 to index
    %3 = memref.load %arg3[%2] : memref<1xi32, #tpu.memory_space<smem>>
    %c0_i32 = arith.constant 0 : i32
    %4 = arith.cmpi eq, %3, %c0_i32 : i32
    %5 = arith.extui %4 : i1 to i32
    %c0_i32_0 = arith.constant 0 : i32
    %6 = arith.cmpi ne, %5, %c0_i32_0 : i32
    scf.if %6 {
      %cst_11 = arith.constant 0.000000e+00 : f32
      %27 = vector.broadcast %cst_11 : f32 to vector<1x8x128xf32>
      %c0_12 = arith.constant 0 : index
      %c0_13 = arith.constant 0 : index
      %c0_14 = arith.constant 0 : index
      %28 = vector.load %arg7[%c0_12, %c0_13, %c0_14] : memref<1x8x128xf32, #tpu.memory_space<vmem>>, vector<1x8x128xf32>
      tpu.vector_store %arg7[%c0_12, %c0_13, %c0_14], %27 {strides = array<i32>} : memref<1x8x128xf32, #tpu.memory_space<vmem>>, vector<1x8x128xf32>,
      %cst_15 = arith.constant 0.000000e+00 : f32
      %29 = vector.broadcast %cst_15 : f32 to vector<8x1xf32>
      %c0_16 = arith.constant 0 : index
      %c0_17 = arith.constant 0 : index
      %30 = vector.load %arg8[%c0_16, %c0_17] : memref<8x1xf32, #tpu.memory_space<vmem>>, vector<8x1xf32>
      tpu.vector_store %arg8[%c0_16, %c0_17], %29 {strides = array<i32>} : memref<8x1xf32, #tpu.memory_space<vmem>>, vector<8x1xf32>,
    } else {
    }
    %c0 = arith.constant 0 : index
    %c0_1 = arith.constant 0 : index
    %c0_2 = arith.constant 0 : index
    %7 = vector.load %arg5[%c0, %c0_1, %c0_2] : memref<1x8x128xbf16, #tpu.memory_space<vmem>>, vector<1x8x128xbf16>
    %8 = vector.shape_cast %7 : vector<1x8x128xbf16> to vector<8x128xbf16>
    %c0_3 = arith.constant 0 : index
    %c0_4 = arith.constant 0 : index
    %c0_5 = arith.constant 0 : index
    %9 = vector.load %arg6[%c0_3, %c0_4, %c0_5] : memref<1x8x128xbf16, #tpu.memory_space<vmem>>, vector<1x8x128xbf16>
    %10 = vector.shape_cast %9 : vector<1x8x128xbf16> to vector<8x128xbf16>
    %cst = arith.constant dense<0.000000e+00> : vector<8x8xf32>
    %11 = tpu.matmul %8, %10, %cst {dimension_numbers = #tpu.dot_dimension_numbers<[1], [1], [0], [0], [0, 0, 1, 0], [], []>} : vector<8x128xbf16>, vector<8x128xbf16>, vector<8x8xf32> -> vector<8x8xf32>
    %12 = math.exp %11 : vector<8x8xf32>
    %c8_i32 = arith.constant 8 : i32
    %13 = arith.muli %1, %c8_i32 : i32
    %c1_i32 = arith.constant 1 : i32
    %14 = arith.addi %3, %c1_i32 : i32
    %c8_i32_6 = arith.constant 8 : i32
    %15 = arith.muli %14, %c8_i32_6 : i32
    %16 = arith.cmpi slt, %13, %15 : i32
    %17 = arith.extui %16 : i1 to i32
    %c0_i32_7 = arith.constant 0 : i32
    %18 = arith.cmpi ne, %17, %c0_i32_7 : i32
    scf.if %18 {
      %c8_i32_11 = arith.constant 8 : i32
      %27 = arith.muli %1, %c8_i32_11 : i32
      %28 = tpu.iota {dimensions = array<i32: 0>} : vector<8x1xi32>
      %29 = vector.broadcast %27 : i32 to vector<8x1xi32>
      %30 = arith.addi %29, %28 : vector<8x1xi32>
      %c8_i32_12 = arith.constant 8 : i32
      %31 = arith.muli %3, %c8_i32_12 : i32
      %32 = tpu.iota {dimensions = array<i32: 1>} : vector<1x8xi32>
      %33 = vector.broadcast %31 : i32 to vector<1x8xi32>
      %34 = arith.addi %33, %32 : vector<1x8xi32>
      %35 = vector.broadcast %30 : vector<8x1xi32> to vector<8x8xi32>
      %36 = vector.broadcast %34 : vector<1x8xi32> to vector<8x8xi32>
      %37 = arith.cmpi sgt, %35, %36 : vector<8x8xi32>
      %cst_13 = arith.constant 0.000000e+00 : f32
      %38 = vector.broadcast %cst_13 : f32 to vector<8x8xf32>
      %39 = arith.select %37, %12, %38 : vector<8x8xi1>, vector<8x8xf32>
      %c0_14 = arith.constant 0 : index
      %c0_15 = arith.constant 0 : index
      %c0_16 = arith.constant 0 : index
      %40 = vector.load %arg7[%c0_14, %c0_15, %c0_16] : memref<1x8x128xf32, #tpu.memory_space<vmem>>, vector<1x8x128xf32>
      %41 = vector.shape_cast %40 : vector<1x8x128xf32> to vector<8x128xf32>
      %42 = arith.truncf %39 : vector<8x8xf32> to vector<8x8xbf16>
      %cst_17 = arith.constant dense<0.000000e+00> : vector<8x128xf32>
      %43 = tpu.matmul %42, %10, %cst_17 {dimension_numbers = #tpu.dot_dimension_numbers<[1], [0], [0], [1], [0, 0, 1, 1], [], []>} : vector<8x8xbf16>, vector<8x128xbf16>, vector<8x128xf32> -> vector<8x128xf32>
      %44 = arith.addf %41, %43 : vector<8x128xf32>
      %c0_18 = arith.constant 0 : index
      %c0_19 = arith.constant 0 : index
      %c0_20 = arith.constant 0 : index
      %45 = vector.load %arg7[%c0_18, %c0_19, %c0_20] : memref<1x8x128xf32, #tpu.memory_space<vmem>>, vector<1x8x128xf32>
      %46 = vector.shape_cast %45 : vector<1x8x128xf32> to vector<8x128xf32>
      %47 = vector.shape_cast %44 : vector<8x128xf32> to vector<1x8x128xf32>
      tpu.vector_store %arg7[%c0_18, %c0_19, %c0_20], %47 {strides = array<i32>} : memref<1x8x128xf32, #tpu.memory_space<vmem>>, vector<1x8x128xf32>,
      %c0_21 = arith.constant 0 : index
      %c0_22 = arith.constant 0 : index
      %48 = vector.load %arg8[%c0_21, %c0_22] : memref<8x1xf32, #tpu.memory_space<vmem>>, vector<8x1xf32>
      %cst_23 = arith.constant dense<0.000000e+00> : vector<8xf32>
      %49 = vector.multi_reduction <add>, %39, %cst_23 [1] : vector<8x8xf32> to vector<8xf32>
      %50 = vector.shape_cast %49 : vector<8xf32> to vector<8x1xf32>
      %51 = arith.addf %48, %50 : vector<8x1xf32>
      %c0_24 = arith.constant 0 : index
      %c0_25 = arith.constant 0 : index
      %52 = vector.load %arg8[%c0_24, %c0_25] : memref<8x1xf32, #tpu.memory_space<vmem>>, vector<8x1xf32>
      tpu.vector_store %arg8[%c0_24, %c0_25], %51 {strides = array<i32>} : memref<8x1xf32, #tpu.memory_space<vmem>>, vector<8x1xf32>,
    } else {
    }
    %true = arith.constant true
    %19 = arith.xori %16, %true : i1
    %20 = arith.extui %19 : i1 to i32
    %c0_i32_8 = arith.constant 0 : i32
    %21 = arith.cmpi ne, %20, %c0_i32_8 : i32
    scf.if %21 {
      %c0_11 = arith.constant 0 : index
      %c0_12 = arith.constant 0 : index
      %c0_13 = arith.constant 0 : index
      %27 = vector.load %arg7[%c0_11, %c0_12, %c0_13] : memref<1x8x128xf32, #tpu.memory_space<vmem>>, vector<1x8x128xf32>
      %28 = vector.shape_cast %27 : vector<1x8x128xf32> to vector<8x128xf32>
      %29 = arith.truncf %12 : vector<8x8xf32> to vector<8x8xbf16>
      %cst_14 = arith.constant dense<0.000000e+00> : vector<8x128xf32>
      %30 = tpu.matmul %29, %10, %cst_14 {dimension_numbers = #tpu.dot_dimension_numbers<[1], [0], [0], [1], [0, 0, 1, 1], [], []>} : vector<8x8xbf16>, vector<8x128xbf16>, vector<8x128xf32> -> vector<8x128xf32>
      %31 = arith.addf %28, %30 : vector<8x128xf32>
      %c0_15 = arith.constant 0 : index
      %c0_16 = arith.constant 0 : index
      %c0_17 = arith.constant 0 : index
      %32 = vector.load %arg7[%c0_15, %c0_16, %c0_17] : memref<1x8x128xf32, #tpu.memory_space<vmem>>, vector<1x8x128xf32>
      %33 = vector.shape_cast %32 : vector<1x8x128xf32> to vector<8x128xf32>
      %34 = vector.shape_cast %31 : vector<8x128xf32> to vector<1x8x128xf32>
      tpu.vector_store %arg7[%c0_15, %c0_16, %c0_17], %34 {strides = array<i32>} : memref<1x8x128xf32, #tpu.memory_space<vmem>>, vector<1x8x128xf32>,
      %c0_18 = arith.constant 0 : index
      %c0_19 = arith.constant 0 : index
      %35 = vector.load %arg8[%c0_18, %c0_19] : memref<8x1xf32, #tpu.memory_space<vmem>>, vector<8x1xf32>
      %cst_20 = arith.constant dense<0.000000e+00> : vector<8xf32>
      %36 = vector.multi_reduction <add>, %12, %cst_20 [1] : vector<8x8xf32> to vector<8xf32>
      %37 = vector.shape_cast %36 : vector<8xf32> to vector<8x1xf32>
      %38 = arith.addf %35, %37 : vector<8x1xf32>
      %c0_21 = arith.constant 0 : index
      %c0_22 = arith.constant 0 : index
      %39 = vector.load %arg8[%c0_21, %c0_22] : memref<8x1xf32, #tpu.memory_space<vmem>>, vector<8x1xf32>
      tpu.vector_store %arg8[%c0_21, %c0_22], %38 {strides = array<i32>} : memref<8x1xf32, #tpu.memory_space<vmem>>, vector<8x1xf32>,
    } else {
    }
    %22 = arith.index_cast %arg1 : i32 to index
    %23 = memref.load %arg4[%22] : memref<1xi32, #tpu.memory_space<smem>>
    %c0_i32_9 = arith.constant 0 : i32
    %24 = arith.cmpi ne, %23, %c0_i32_9 : i32
    %25 = arith.extui %24 : i1 to i32
    %c0_i32_10 = arith.constant 0 : i32
    %26 = arith.cmpi ne, %25, %c0_i32_10 : i32
    scf.if %26 {
      %c0_11 = arith.constant 0 : index
      %c0_12 = arith.constant 0 : index
      %27 = vector.load %arg8[%c0_11, %c0_12] : memref<8x1xf32, #tpu.memory_space<vmem>>, vector<8x1xf32>
      %cst_13 = arith.constant 1.000000e-10 : f32
      %28 = vector.broadcast %cst_13 : f32 to vector<8x1xf32>
      %29 = arith.addf %27, %28 : vector<8x1xf32>
      %30 = tpu.reciprocal %29 {approx = true} : vector<8x1xf32> -> vector<8x1xf32>
      %c0_14 = arith.constant 0 : index
      %c0_15 = arith.constant 0 : index
      %c0_16 = arith.constant 0 : index
      %31 = vector.load %arg7[%c0_14, %c0_15, %c0_16] : memref<1x8x128xf32, #tpu.memory_space<vmem>>, vector<1x8x128xf32>
      %32 = vector.shape_cast %31 : vector<1x8x128xf32> to vector<8x128xf32>
      %33 = vector.broadcast %30 : vector<8x1xf32> to vector<8x128xf32>
      %34 = arith.mulf %32, %33 : vector<8x128xf32>
      %c0_17 = arith.constant 0 : index
      %c0_18 = arith.constant 0 : index
      %c0_19 = arith.constant 0 : index
      %35 = vector.load %arg7[%c0_17, %c0_18, %c0_19] : memref<1x8x128xf32, #tpu.memory_space<vmem>>, vector<1x8x128xf32>
      %36 = vector.shape_cast %35 : vector<1x8x128xf32> to vector<8x128xf32>
      %37 = vector.shape_cast %34 : vector<8x128xf32> to vector<1x8x128xf32>
      tpu.vector_store %arg7[%c0_17, %c0_18, %c0_19], %37 {strides = array<i32>} : memref<1x8x128xf32, #tpu.memory_space<vmem>>, vector<1x8x128xf32>,
    } else {
    }
    return
  }
  func.func @transform_0(%arg0: i32, %arg1: i32, %arg2: memref<1xi32, #tpu.memory_space<smem>>, %arg3: memref<1xi32, #tpu.memory_space<smem>>, %arg4: memref<1xi32, #tpu.memory_space<smem>>) -> (i32, i32, i32) {
    %0 = arith.index_cast %arg1 : i32 to index
    %1 = memref.load %arg2[%0] : memref<1xi32, #tpu.memory_space<smem>>
    %c0_i32 = arith.constant 0 : i32
    %c0_i32_0 = arith.constant 0 : i32
    return %arg0, %1, %c0_i32 : i32, i32, i32
  }
  func.func @transform_1(%arg0: i32, %arg1: i32, %arg2: memref<1xi32, #tpu.memory_space<smem>>, %arg3: memref<1xi32, #tpu.memory_space<smem>>, %arg4: memref<1xi32, #tpu.memory_space<smem>>) -> (i32, i32, i32) {
    %0 = arith.index_cast %arg1 : i32 to index
    %1 = memref.load %arg3[%0] : memref<1xi32, #tpu.memory_space<smem>>
    %c0_i32 = arith.constant 0 : i32
    %c0_i32_0 = arith.constant 0 : i32
    return %arg0, %1, %c0_i32 : i32, i32, i32
  }
  func.func @transform_2(%arg0: i32, %arg1: i32, %arg2: memref<1xi32, #tpu.memory_space<smem>>, %arg3: memref<1xi32, #tpu.memory_space<smem>>, %arg4: memref<1xi32, #tpu.memory_space<smem>>) -> (i32, i32, i32) {
    %0 = arith.index_cast %arg1 : i32 to index
    %1 = memref.load %arg2[%0] : memref<1xi32, #tpu.memory_space<smem>>
    %c0_i32 = arith.constant 0 : i32
    %c0_i32_0 = arith.constant 0 : i32
    return %arg0, %1, %c0_i32 : i32, i32, i32
  }
}

</mosaic_0001>

<llo_original>
// kernel: general_attention.1
$region0: #{general_attention.1}
  #allocation0 [shape = 'u32[]', space=smem, size = 0x4, offset = 0x4, fixed_abs, tag = 'smem constant byte address 0x4 - core index']
  #allocation1 [shape = 'u32[144,128]{1,0:T(1,128)}', space=vmem, size = 0x12000, scoped, tag = 'internal scratch']
  #allocation2 [shape = 'f32[8,1]{1,0:T(8,128)}', space=vmem, size = 0x1000, scoped, tag = 'scratch operand']
  #allocation3 [shape = 's32[1]{0}', space=sflag, size = 0x4, scoped, tag = 'scoped memory for general_attention.1']
  #allocation4 [shape = 's32[1]{0:T(128)S(6)}', space=smem, size = 0x200, scoped, tag = 'prefetched SMEM operand 0']
  #allocation5 [shape = 's32[1]{0:T(128)S(6)}', space=smem, size = 0x200, scoped, tag = 'prefetched SMEM operand 1']
  #allocation6 [shape = 's32[1]{0:T(128)S(6)}', space=smem, size = 0x200, scoped, tag = 'prefetched SMEM operand 2']
  %s0 = inlined_call_operand.<no memory space> [shape: s32[1], index: 0, kind: input, shape index: {}, may-alias: {0,1}]
  %s1 = inlined_call_operand.<no memory space> [shape: s32[1], index: 1, kind: input, shape index: {}, may-alias: {0,1}]
  %s2 = inlined_call_operand.<no memory space> [shape: s32[1], index: 2, kind: input, shape index: {}]
  %s3 = inlined_call_operand.vmem [shape: bf16[2,8,128], index: 3, kind: input, shape index: {}]
  %s4 = inlined_call_operand.vmem [shape: bf16[2,8,128], index: 4, kind: input, shape index: {}]
  %s5 = inlined_call_operand.hbm [shape: f32[2,8,128], index: 5, kind: output, shape index: {}]
  %s6 = sld [smem:[#allocation0]]
  $region57: #{general_attention.1} parent=0
    _
  %s8 = ssub.s32 1, %s6
  %s9 = scalar_select 0, %s8, %s6
  %10 = sst [smem:[#allocation4]] %s0
  %11 = sst [smem:[#allocation5]] %s1
  %12 = sst [smem:[#allocation6]] %s2
  $region1: #{general_attention.1} parent=0
    #allocation7 [shape = 'u8[8192]{0}', space=vmem, size = 0x2000, scoped, tag = 'output window, operand 0']
    #allocation8 [shape = 's32[2]{0}', space=sflag, size = 0x8, scoped, tag = 'scoped memory for general_attention.1']
    %13 = vsyncpa [#allocation8], 0
    %s14 = scalar_lea.sflag [#allocation8], 1
    %15 = vsyncpa %s14, 0
    loop: start=0, step=1, limit=4
    $region2: #{general_attention.1} parent=1 // loop_pre_header
      _
    $region3: #{general_attention.1} parent=1 // loop_header
      %s17 = sphi 0, %s21
      %p18 = scmp.ge.s32.totalorder %s17, 4
      %s24 = sphi 0, %s36
      %s25 = sphi 0, %s32
      %s26 = sphi 0, %s24
      %s27 = sphi 0, %s25
      %s28 = sphi 0, %s26
      %s29 = sphi 0, %s27
      %s43 = sphi 0, %s45
      %s46 = sphi 0, %s43
      %s47 = sphi 0, %s46
      %s63 = sphi 0, %s47
      %s73 = sphi 0, %s75
      %s76 = sphi 0, %s73
      %s77 = sphi 0, %s76
      %s93 = sphi 0, %s77
      %s103 = sphi 0, %s105
      %s106 = sphi 0, %s103
      %s107 = sphi 0, %s106
      %s123 = sphi 0, %s107
    $region4: #{general_attention.1} parent=1 // loop_header_branch
      %20 = sbr.rel (%p18) target = $region8
    $region5: #{general_attention.1} parent=1 // loop_body
      %s22 = ssub.s32 %s17, 1
      %s23 = ssub.s32 %s17, 2
      %s30 = sadd.s32 1, %s25
      %p31 = scmp.ge.s32.totalorder %s30, 1
      %s32 = scalar_select %p31, 0, %s30
      %s33 = sadd.s32 1, %s24
      %s34 = scalar_select %p31, %s33, %s24
      %p35 = scmp.ge.s32.totalorder %s34, 2
      %s36 = scalar_select %p35, 0, %s34
      %s37 = sld [smem:[#allocation4 + %s25]]
      %s38 = sld [smem:[#allocation4 + %s32]]
      %s39 = ssub.s32 %s24, %s36
      %s40 = ssub.s32 %s37, %s38
      %s41 = sor.u32 %s39, %s40
      %p42 = scmp.eq.s32.totalorder %s41, 0
      %s44 = sadd.s32 %s43, 1
      %s45 = scalar_select %p42, %s43, %s44
      %p48 = pneg %p42
      %p49 = scmp.eq.s32.totalorder %s17, 1
      %p50 = por %p48, %p49
      %p51 = scmp.ne.s32.totalorder %s43, %s46
      %p52 = scmp.eq.s32.totalorder %s17, 0
      %p53 = por %p51, %p52
      %p54 = scmp.ne.s32.totalorder %s43, %s46
      %p55 = scmp.eq.s32.totalorder %s22, 1
      %p56 = por %p54, %p55
      %p57 = scmp.ne.s32.totalorder %s46, %s47
      %p58 = scmp.eq.s32.totalorder %s22, 0
      %p59 = por %p57, %p58
      %p60 = scmp.ne.s32.totalorder %s46, %s47
      %p61 = scmp.eq.s32.totalorder %s23, 1
      %p62 = por %p60, %p61
      %p64 = scmp.ne.s32.totalorder %s47, %s63
      %p65 = scmp.eq.s32.totalorder %s23, 0
      %p66 = por %p64, %p65
      %s67 = sld [smem:[#allocation5 + %s25]]
      %s68 = sld [smem:[#allocation5 + %s32]]
      %s69 = ssub.s32 %s24, %s36
      %s70 = ssub.s32 %s67, %s68
      %s71 = sor.u32 %s69, %s70
      %p72 = scmp.eq.s32.totalorder %s71, 0
      %s74 = sadd.s32 %s73, 1
      %s75 = scalar_select %p72, %s73, %s74
      %p78 = pneg %p72
      %p79 = scmp.eq.s32.totalorder %s17, 1
      %p80 = por %p78, %p79
      %p81 = scmp.ne.s32.totalorder %s73, %s76
      %p82 = scmp.eq.s32.totalorder %s17, 0
      %p83 = por %p81, %p82
      %p84 = scmp.ne.s32.totalorder %s73, %s76
      %p85 = scmp.eq.s32.totalorder %s22, 1
      %p86 = por %p84, %p85
      %p87 = scmp.ne.s32.totalorder %s76, %s77
      %p88 = scmp.eq.s32.totalorder %s22, 0
      %p89 = por %p87, %p88
      %p90 = scmp.ne.s32.totalorder %s76, %s77
      %p91 = scmp.eq.s32.totalorder %s23, 1
      %p92 = por %p90, %p91
      %p94 = scmp.ne.s32.totalorder %s77, %s93
      %p95 = scmp.eq.s32.totalorder %s23, 0
      %p96 = por %p94, %p95
      %s97 = sld [smem:[#allocation4 + %s25]]
      %s98 = sld [smem:[#allocation4 + %s32]]
      %s99 = ssub.s32 %s24, %s36
      %s100 = ssub.s32 %s97, %s98
      %s101 = sor.u32 %s99, %s100
      %p102 = scmp.eq.s32.totalorder %s101, 0
      %s104 = sadd.s32 %s103, 1
      %s105 = scalar_select %p102, %s103, %s104
      %p108 = pneg %p102
      %p109 = scmp.eq.s32.totalorder %s17, 1
      %p110 = por %p108, %p109
      %p111 = scmp.ne.s32.totalorder %s103, %s106
      %p112 = scmp.eq.s32.totalorder %s17, 0
      %p113 = por %p111, %p112
      %p114 = scmp.ne.s32.totalorder %s103, %s106
      %p115 = scmp.eq.s32.totalorder %s22, 1
      %p116 = por %p114, %p115
      %p117 = scmp.ne.s32.totalorder %s106, %s107
      %p118 = scmp.eq.s32.totalorder %s22, 0
      %p119 = por %p117, %p118
      %p120 = scmp.ne.s32.totalorder %s106, %s107
      %p121 = scmp.eq.s32.totalorder %s23, 1
      %p122 = por %p120, %p121
      %p124 = scmp.ne.s32.totalorder %s107, %s123
      %p125 = scmp.eq.s32.totalorder %s23, 0
      %p126 = por %p124, %p125
      %p127 = scmp.le.s32.totalorder 1, %s17
      %p128 = scmp.lt.s32.totalorder %s17, 3
      %p129 = pnand %p127, %p128
      %p130 = pneg %p129
      // Predicated region
      $region9: #{general_attention.1} parent=5 // pred_check
        _
      $region10: #{general_attention.1} parent=5 // pred_check_branch
        %132 = sbr.rel (%p129) target = $region12
      $region11: #{general_attention.1} parent=5 // pred_region
        %s133 = ssub.s32 %s17, 1
      $region12: #{general_attention.1} parent=5 // pred_fallthru
        _
      %p134 = scmp.lt.s32.totalorder %s17, 2
      // Predicated region
      $region13: #{general_attention.1} parent=5 // pred_check
        %p135 = pneg %p134
      $region14: #{general_attention.1} parent=5 // pred_check_branch
        %137 = sbr.rel (%p135) target = $region16
      $region15: #{general_attention.1} parent=5 // pred_region
        // Predicated region
        $region17: #{general_attention.1} parent=15 // pred_check
          %p138 = pneg %p53
        $region18: #{general_attention.1} parent=15 // pred_check_branch
          %140 = sbr.rel (%p138) target = $region20
        $region19: #{general_attention.1} parent=15 // pred_region
          %s141 = sld [smem:[#allocation4 + %s25]]
          %p142 = scmp.lt.s32.totalorder %s24, 1
          %s143 = scalar_select %p142, %s24, 1
          %p144 = scmp.lt.s32.totalorder %s141, 0
          %s145 = scalar_select %p144, %s141, 0
          %s146 = sadd.s32 %s145, %s143
          %s147 = smul.addr %s146, 4
          %s148 = scalar_lea.vmem %s3, %s147
          %s149 = sld [smem:[#allocation4 + %s25]]
        $region20: #{general_attention.1} parent=15 // pred_fallthru
          _
        // Predicated region
        $region21: #{general_attention.1} parent=15 // pred_check
          %p150 = pneg %p83
        $region22: #{general_attention.1} parent=15 // pred_check_branch
          %152 = sbr.rel (%p150) target = $region24
        $region23: #{general_attention.1} parent=15 // pred_region
          %s153 = sld [smem:[#allocation5 + %s25]]
          %p154 = scmp.lt.s32.totalorder %s24, 1
          %s155 = scalar_select %p154, %s24, 1
          %p156 = scmp.lt.s32.totalorder %s153, 0
          %s157 = scalar_select %p156, %s153, 0
          %s158 = sadd.s32 %s157, %s155
          %s159 = smul.addr %s158, 4
          %s160 = scalar_lea.vmem %s4, %s159
          %s161 = sld [smem:[#allocation5 + %s25]]
        $region24: #{general_attention.1} parent=15 // pred_fallthru
          _
      $region16: #{general_attention.1} parent=5 // pred_fallthru
        _
      %p162 = scmp.le.s32.totalorder 1, %s17
      %p163 = scmp.lt.s32.totalorder %s17, 3
      %p164 = pnand %p162, %p163
      %p165 = pneg %p164
      // Predicated region
      $region25: #{general_attention.1} parent=5 // pred_check
        _
      $region26: #{general_attention.1} parent=5 // pred_check_branch
        %167 = sbr.rel (%p164) target = $region28
      $region27: #{general_attention.1} parent=5 // pred_region
        %s168 = ssub.s32 %s17, 1
        %s169 = sld [smem:[#allocation4 + %s27]]
        %p170 = scmp.lt.s32.totalorder %s26, 1
        %s171 = scalar_select %p170, %s26, 1
        %p172 = scmp.lt.s32.totalorder %s169, 0
        %s173 = scalar_select %p172, %s169, 0
        %s174 = sadd.s32 %s173, %s171
        %s175 = smul.addr %s174, 4
        %s176 = scalar_lea.vmem %s3, %s175
        %p177 = pneg %p59
        %p178 = pneg %p56
        %s179 = sld [smem:[#allocation5 + %s27]]
        %p180 = scmp.lt.s32.totalorder %s26, 1
        %s181 = scalar_select %p180, %s26, 1
        %p182 = scmp.lt.s32.totalorder %s179, 0
        %s183 = scalar_select %p182, %s179, 0
        %s184 = sadd.s32 %s183, %s181
        %s185 = smul.addr %s184, 4
        %s186 = scalar_lea.vmem %s4, %s185
        %p187 = pneg %p89
        %p188 = pneg %p86
        %p189 = pneg %p119
        %p190 = pneg %p116
        %s191 = sand.u32 %s106, 1
        %s192 = scalar_lea.sflag [#allocation8], %s191
        %s193 = sand.u32 %s106, 1
        %s194 = smul.addr %s193, 8
        %s195 = scalar_lea.vmem [#allocation7], %s194
        %s196 = sld [smem:[#allocation4 + %s27]]
        %p197 = scmp.lt.s32.totalorder %s26, 1
        %s198 = scalar_select %p197, %s26, 1
        %p199 = scmp.lt.s32.totalorder %s196, 0
        %s200 = scalar_select %p199, %s196, 0
        %s201 = sadd.s32 %s200, %s198
        %s202 = smul.addr %s201, 4
        %s203 = scalar_lea.vmem %s3, %s202
        %s204 = sld [smem:[#allocation4 + %s27]]
        %s205 = sld [smem:[#allocation5 + %s27]]
        %p206 = scmp.lt.s32.totalorder %s26, 1
        %s207 = scalar_select %p206, %s26, 1
        %p208 = scmp.lt.s32.totalorder %s205, 0
        %s209 = scalar_select %p208, %s205, 0
        %s210 = sadd.s32 %s209, %s207
        %s211 = smul.addr %s210, 4
        %s212 = scalar_lea.vmem %s4, %s211
        %s213 = sld [smem:[#allocation5 + %s27]]
        %s214 = sld [smem:[#allocation4 + %s27]]
        %s216 = sld [smem:[#allocation4 + %s27]]
        %s217 = sld [smem:[#allocation5 + %s27]]
        %p218 = scmp.eq.s32.totalorder %s217, 0
        // Predicated region
        $region29: #{general_attention.1} parent=27 // pred_check
          %p219 = pneg %p218
        $region30: #{general_attention.1} parent=27 // pred_check_branch
          %221 = sbr.rel (%p219) target = $region32
        $region31: #{general_attention.1} parent=27 // pred_region
          %222 = vst [vmem:[%s195] sm:$0xff] 0.0
          %vm223 = vcmask 7168
          %224 = vst.msk [vmem:[#allocation2] sm:$0xff] %vm223, 0.0
        $region32: #{general_attention.1} parent=27 // pred_fallthru
          _
        %v225 = vld [vmem:[%s203] sm:$0xf]
        %v226 = vld [vmem:[%s212] sm:$0xf]
        %227 = vmatprep.subr.bf16.mxu0 0
        %228 = vmatpush1.bf16.xpose.msra.mxu0 %v226
        %229 = vmatprep.subr.bf16.mxu0 0
        %230 = vmatpush1.bf16.xpose.msra.mxu0 0
        %231 = vmatprep.subr.bf16.mxu0 0
        %232 = vmatpush1.bf16.xpose.msra.mxu0 0
        %233 = vmatprep.subr.bf16.mxu0 0
        %234 = vmatpush1.bf16.xpose.msra.mxu0 0
        %235 = vmatprep.subr.bf16.mxu0 0
        %236 = vmatpush1.bf16.xpose.msra.mxu0 0
        %237 = vmatprep.subr.bf16.mxu0 0
        %238 = vmatpush1.bf16.xpose.msra.mxu0 0
        %239 = vmatprep.subr.bf16.mxu0 0
        %240 = vmatpush1.bf16.xpose.msra.mxu0 0
        %241 = vmatprep.subr.bf16.mxu0 0
        %242 = vmatpush1.bf16.xpose.msra.mxu0 0
        %243 = vmatprep.subr.bf16.mxu0 0
        %244 = vmatpush1.bf16.xpose.msra.mxu0 0
        %245 = vmatprep.subr.bf16.mxu0 0
        %246 = vmatpush1.bf16.xpose.msra.mxu0 0
        %247 = vmatprep.subr.bf16.mxu0 0
        %248 = vmatpush1.bf16.xpose.msra.mxu0 0
        %249 = vmatprep.subr.bf16.mxu0 0
        %250 = vmatpush1.bf16.xpose.msra.mxu0 0
        %251 = vmatprep.subr.bf16.mxu0 0
        %252 = vmatpush1.bf16.xpose.msra.mxu0 0
        %253 = vmatprep.subr.bf16.mxu0 0
        %254 = vmatpush1.bf16.xpose.msra.mxu0 0
        %255 = vmatprep.subr.bf16.mxu0 0
        %256 = vmatpush1.bf16.xpose.msra.mxu0 0
        %257 = vmatprep.subr.bf16.mxu0 0
        %258 = vmatpush1.bf16.xpose.msra.mxu0 0
        %259 = vmatprep.mubr.bf16.mxu0 0
        %260 = vmatmul.mubr.bf16.gmra.mrb[0].mxu0 %v225
        %v261 = vpop.f32.mrb[0].mxu0
        %v262 = vadd.f32 0.0, %v261
        %v263 = vpop.f32.mrb[0].mxu0
        %v264 = vpop.f32.mrb[0].mxu0
        %v265 = vpop.f32.mrb[0].mxu0
        %266 = vdwg.mxu0
        %v267 = vmul.f32 %v262, 1.442695
        %v268 = vpow.pop %v267
        %s269 = smul.u32 %s216, 8
        %s270 = sadd.s32 %s217, 1
        %s271 = smul.u32 %s270, 8
        %p272 = scmp.lt.s32.totalorder %s269, %s271
        // Predicated region
        $region33: #{general_attention.1} parent=27 // pred_check
          %p273 = pneg %p272
        $region34: #{general_attention.1} parent=27 // pred_check_branch
          %275 = sbr.rel (%p273) target = $region36
        $region35: #{general_attention.1} parent=27 // pred_region
          %v276 = vlaneseq
          %v277 = vshrl.u32 %v276, 7
          %v278 = vstv %s269
          %v279 = vadd.s32 %v278, %v277
          %s280 = smul.u32 %s217, 8
          %v281 = vlaneseq
          %v282 = vand.u32 %v281, 127
          %v283 = vstv %s280
          %v284 = vadd.s32 %v283, %v282
          %vm285 = vcmp.gt.s32.totalorder %v279, %v284
          %v286 = vsel %vm285, %v268, 0.0
          %v287 = vld [vmem:[%s195] sm:$0xff]
          %v288 = vpack.c.bf16 %v286, %v286
          %vm289 = vcmask 64512
          %v291 = vsel %vm289, %v288, 0
          %vm293 = vcmask 1043456
          %v295 = vsel %vm293, %v226, 0
          %297 = vmatprep.subr.bf16.mxu0 0
          %298 = vmatpush1.bf16.msra.mxu0 %v295
          %299 = vmatprep.subr.bf16.mxu0 0
          %300 = vmatpush1.bf16.msra.mxu0 0
          %301 = vmatprep.subr.bf16.mxu0 0
          %302 = vmatpush1.bf16.msra.mxu0 0
          %303 = vmatprep.subr.bf16.mxu0 0
          %304 = vmatpush1.bf16.msra.mxu0 0
          %305 = vmatprep.subr.bf16.mxu0 0
          %306 = vmatpush1.bf16.msra.mxu0 0
          %307 = vmatprep.subr.bf16.mxu0 0
          %308 = vmatpush1.bf16.msra.mxu0 0
          %309 = vmatprep.subr.bf16.mxu0 0
          %310 = vmatpush1.bf16.msra.mxu0 0
          %311 = vmatprep.subr.bf16.mxu0 0
          %312 = vmatpush1.bf16.msra.mxu0 0
          %313 = vmatprep.subr.bf16.mxu0 0
          %314 = vmatpush1.bf16.msra.mxu0 0
          %315 = vmatprep.subr.bf16.mxu0 0
          %316 = vmatpush1.bf16.msra.mxu0 0
          %317 = vmatprep.subr.bf16.mxu0 0
          %318 = vmatpush1.bf16.msra.mxu0 0
          %319 = vmatprep.subr.bf16.mxu0 0
          %320 = vmatpush1.bf16.msra.mxu0 0
          %321 = vmatprep.subr.bf16.mxu0 0
          %322 = vmatpush1.bf16.msra.mxu0 0
          %323 = vmatprep.subr.bf16.mxu0 0
          %324 = vmatpush1.bf16.msra.mxu0 0
          %325 = vmatprep.subr.bf16.mxu0 0
          %326 = vmatpush1.bf16.msra.mxu0 0
          %327 = vmatprep.subr.bf16.mxu0 0
          %328 = vmatpush1.bf16.msra.mxu0 0
          %329 = vmatprep.mubr.bf16.mxu0 0
          %330 = vmatmul.mubr.bf16.gmra.mrb[0].mxu0 %v291
          %v331 = vpop.f32.mrb[0].mxu0
          %v332 = vadd.f32 0.0, %v331
          %v333 = vpop.f32.mrb[0].mxu0
          %v334 = vpop.f32.mrb[0].mxu0
          %v335 = vpop.f32.mrb[0].mxu0
          %336 = vdwg.mxu0
          %v337 = vadd.f32 %v287, %v332
          %338 = vst [vmem:[%s195] sm:$0xff] %v337
          %v339 = vld [vmem:[#allocation2] sm:$0xff]
          %v340 = vsel %vm289, %v286, 0.0
          %341 = vadd.xlane.f32.xlu0 %v340
          %v342 = vpop.xlane.xlu0 %341
          %v343 = vadd.f32 %v339, %v342
          %vm344 = vcmask 7168
          %345 = vst.msk [vmem:[#allocation2] sm:$0xff] %vm344, %v343
        $region36: #{general_attention.1} parent=27 // pred_fallthru
          _
        %p346 = scmp.ge.s32.totalorder %s269, %s271
        // Predicated region
        $region37: #{general_attention.1} parent=27 // pred_check
          %p347 = pneg %p346
        $region38: #{general_attention.1} parent=27 // pred_check_branch
          %349 = sbr.rel (%p347) target = $region40
        $region39: #{general_attention.1} parent=27 // pred_region
          %v350 = vld [vmem:[%s195] sm:$0xff]
          %v351 = vpack.c.bf16 %v268, %v268
          %vm352 = vcmask 64512
          %v354 = vsel %vm352, %v351, 0
          %vm356 = vcmask 1043456
          %v358 = vsel %vm356, %v226, 0
          %360 = vmatprep.subr.bf16.mxu0 0
          %361 = vmatpush1.bf16.msra.mxu0 %v358
          %362 = vmatprep.subr.bf16.mxu0 0
          %363 = vmatpush1.bf16.msra.mxu0 0
          %364 = vmatprep.subr.bf16.mxu0 0
          %365 = vmatpush1.bf16.msra.mxu0 0
          %366 = vmatprep.subr.bf16.mxu0 0
          %367 = vmatpush1.bf16.msra.mxu0 0
          %368 = vmatprep.subr.bf16.mxu0 0
          %369 = vmatpush1.bf16.msra.mxu0 0
          %370 = vmatprep.subr.bf16.mxu0 0
          %371 = vmatpush1.bf16.msra.mxu0 0
          %372 = vmatprep.subr.bf16.mxu0 0
          %373 = vmatpush1.bf16.msra.mxu0 0
          %374 = vmatprep.subr.bf16.mxu0 0
          %375 = vmatpush1.bf16.msra.mxu0 0
          %376 = vmatprep.subr.bf16.mxu0 0
          %377 = vmatpush1.bf16.msra.mxu0 0
          %378 = vmatprep.subr.bf16.mxu0 0
          %379 = vmatpush1.bf16.msra.mxu0 0
          %380 = vmatprep.subr.bf16.mxu0 0
          %381 = vmatpush1.bf16.msra.mxu0 0
          %382 = vmatprep.subr.bf16.mxu0 0
          %383 = vmatpush1.bf16.msra.mxu0 0
          %384 = vmatprep.subr.bf16.mxu0 0
          %385 = vmatpush1.bf16.msra.mxu0 0
          %386 = vmatprep.subr.bf16.mxu0 0
          %387 = vmatpush1.bf16.msra.mxu0 0
          %388 = vmatprep.subr.bf16.mxu0 0
          %389 = vmatpush1.bf16.msra.mxu0 0
          %390 = vmatprep.subr.bf16.mxu0 0
          %391 = vmatpush1.bf16.msra.mxu0 0
          %392 = vmatprep.mubr.bf16.mxu0 0
          %393 = vmatmul.mubr.bf16.gmra.mrb[0].mxu0 %v354
          %v394 = vpop.f32.mrb[0].mxu0
          %v395 = vadd.f32 0.0, %v394
          %v396 = vpop.f32.mrb[0].mxu0
          %v397 = vpop.f32.mrb[0].mxu0
          %v398 = vpop.f32.mrb[0].mxu0
          %399 = vdwg.mxu0
          %v400 = vadd.f32 %v350, %v395
          %401 = vst [vmem:[%s195] sm:$0xff] %v400
          %v402 = vld [vmem:[#allocation2] sm:$0xff]
          %v403 = vsel %vm352, %v268, 0.0
          %404 = vadd.xlane.f32.xlu0 %v403
          %v405 = vpop.xlane.xlu0 %404
          %v406 = vadd.f32 %v402, %v405
          %vm407 = vcmask 7168
          %408 = vst.msk [vmem:[#allocation2] sm:$0xff] %vm407, %v406
        $region40: #{general_attention.1} parent=27 // pred_fallthru
          _
        %s409 = sld [smem:[#allocation6 + %s27]]
        %p410 = scmp.ne.s32.totalorder %s409, 0
        // Predicated region
        $region41: #{general_attention.1} parent=27 // pred_check
          %p411 = pneg %p410
        $region42: #{general_attention.1} parent=27 // pred_check_branch
          %413 = sbr.rel (%p411) target = $region44
        $region43: #{general_attention.1} parent=27 // pred_region
          %v414 = vld [vmem:[#allocation2] sm:$0xff]
          %v415 = vadd.f32 %v414, 1e-10
          %v416 = vrcp.pop %v415
          %v417 = vld [vmem:[%s195] sm:$0xff]
          %419 = vset.pattern.permute.xlu0 0
          %420 = vperm.xlu0 %419, %v416
          %v421 = vpop.permute.xlu0 %420
          %v423 = vmul.f32 %v417, %v421
          %424 = vst [vmem:[%s195] sm:$0xff] %v423
        $region44: #{general_attention.1} parent=27 // pred_fallthru
          _
        %s425 = sand.u32 %s106, 1
        %s426 = scalar_lea.sflag [#allocation8], %s425
        %s427 = sand.u32 %s106, 1
        %s428 = smul.addr %s427, 8
        %s429 = scalar_lea.vmem [#allocation7], %s428
        // Predicated region
        $region45: #{general_attention.1} parent=27 // pred_check
          %p430 = pneg %p116
        $region46: #{general_attention.1} parent=27 // pred_check_branch
          %432 = sbr.rel (%p430) target = $region48
        $region47: #{general_attention.1} parent=27 // pred_region
          %s433 = sld [smem:[#allocation4 + %s27]]
          %s435 = ssub.s32 128, 128
          %436 = vsyncadd %s426, %s435
          %s437 = sadd.s32 %s433, %s26
          %s438 = smul.addr %s437, 128
          %s439 = scalar_lea.hbm %s5, %s438
          %s441 = sshll.u32 %s429, 4
          %s442 = int_to_ptr.vmem [resolvable:$true] %s441
          %444 = dma.vmem_to_hbm [thread:$0]  %s442, 128, %s439, %s426
        $region48: #{general_attention.1} parent=27 // pred_fallthru
          _
      $region28: #{general_attention.1} parent=5 // pred_fallthru
        _
      %p445 = scmp.le.s32.totalorder 2, %s17
      // Predicated region
      $region49: #{general_attention.1} parent=5 // pred_check
        %p446 = pneg %p445
      $region50: #{general_attention.1} parent=5 // pred_check_branch
        %448 = sbr.rel (%p446) target = $region52
      $region51: #{general_attention.1} parent=5 // pred_region
        %s449 = ssub.s32 %s17, 2
        // Predicated region
        $region53: #{general_attention.1} parent=51 // pred_check
          %p450 = pneg %p122
        $region54: #{general_attention.1} parent=51 // pred_check_branch
          %452 = sbr.rel (%p450) target = $region56
        $region55: #{general_attention.1} parent=51 // pred_region
          %s453 = sand.u32 %s107, 1
          %s454 = scalar_lea.sflag [#allocation8], %s453
          %s455 = sand.u32 %s107, 1
          %s456 = smul.addr %s455, 8
          %s457 = scalar_lea.vmem [#allocation7], %s456
          %458 = dma.done %s454, 128
        $region56: #{general_attention.1} parent=51 // pred_fallthru
          _
      $region52: #{general_attention.1} parent=5 // pred_fallthru
        _
    $region6: #{general_attention.1} parent=1 // loop_footer
      %s21 = sadd.s32 1, %s17
    $region7: #{general_attention.1} parent=1 // loop_footer_branch
      %16 = sbr.rel target = $region3
    $region8: #{general_attention.1} parent=1 // loop_exit
      _
    %459 = vsyncpa [#allocation8], 1
    %s460 = scalar_lea.sflag [#allocation8], 1
    %461 = vsyncpa %s460, 1

</llo_original>
